<compile_context>
chip_gen: v7x
topology: tpu7x:2x2x1
jax: 0.10.0
libtpu: 0.0.40
codegen_flags: <defaults>
</compile_context>

<pallas_src>
import jax
import jax.numpy as jnp
from jax.experimental import pallas as pl
from jax.experimental.pallas import tpu as pltpu

VMEM_LIMIT = 32 * 1024 * 1024  # within default/physical scoped VMEM on v5e/v6e/v7x


def _row_tile(n, cap):
    # cap is a multiple of 8; if n <= cap the block equals the full dim (always legal).
    return n if n <= cap else cap


# ---------------------------------------------------------------------------
# res branch: Linear(L -> 2H, no bias) + BatchNorm1d(eval) + ReLU  (row-tiled)
# ---------------------------------------------------------------------------
def _res_kernel(x_ref, w_ref, scale_ref, shift_ref, o_ref):
    y = jnp.dot(x_ref[...], w_ref[...], preferred_element_type=jnp.float32)
    o_ref[...] = jnp.maximum(y * scale_ref[...] + shift_ref[...], 0.0)


def res_branch(x2d, w_bf16, scale, shift):
    n, l = x2d.shape
    d = w_bf16.shape[1]
    tm = _row_tile(n, 256)
    return pl.pallas_call(
        _res_kernel,
        grid=(pl.cdiv(n, tm),),
        out_shape=jax.ShapeDtypeStruct((n, d), jnp.float32),
        in_specs=[pl.BlockSpec((tm, l), lambda i: (i, 0)),
                  pl.BlockSpec((l, d), lambda i: (0, 0)),
                  pl.BlockSpec((1, d), lambda i: (0, 0)),
                  pl.BlockSpec((1, d), lambda i: (0, 0))],
        out_specs=pl.BlockSpec((tm, d), lambda i: (i, 0)),
        compiler_params=pltpu.CompilerParams(
            dimension_semantics=("parallel",),
            vmem_limit_bytes=VMEM_LIMIT),
    )(x2d.astype(jnp.bfloat16), w_bf16, scale, shift)


# ---------------------------------------------------------------------------
# Hoisted LSTM input projection:  gates_x = X @ [W_ih_fwd | W_ih_rev] + bias
# One big MXU matmul over all (s*b) rows, tiled over rows and the 8H columns.
# ---------------------------------------------------------------------------
def _gates_x_kernel(x_ref, w_ref, b_ref, o_ref):
    o_ref[...] = (jnp.dot(x_ref[...], w_ref[...],
                          preferred_element_type=jnp.float32) + b_ref[...])


def gates_x(x2d, w_bf16, bias):
    n, d_in = x2d.shape
    d_out = w_bf16.shape[1]
    tm = _row_tile(n, 256)
    tn = d_out if d_out <= 1024 else 1024
    return pl.pallas_call(
        _gates_x_kernel,
        grid=(pl.cdiv(n, tm), pl.cdiv(d_out, tn)),
        out_shape=jax.ShapeDtypeStruct((n, d_out), jnp.float32),
        in_specs=[pl.BlockSpec((tm, d_in), lambda i, j: (i, 0)),
                  pl.BlockSpec((d_in, tn), lambda i, j: (0, j)),
                  pl.BlockSpec((1, tn), lambda i, j: (0, j))],
        out_specs=pl.BlockSpec((tm, tn), lambda i, j: (i, j)),
        compiler_params=pltpu.CompilerParams(
            dimension_semantics=("parallel", "parallel"),
            vmem_limit_bytes=VMEM_LIMIT),
    )(x2d.astype(jnp.bfloat16), w_bf16, bias)


# ---------------------------------------------------------------------------
# Fused bidirectional LSTM recurrence: grid over time, both directions' states
# carried in one (2b, H) VMEM scratch pair; single (2b, H) x (H, 8H) matmul / step.
# ---------------------------------------------------------------------------
def _bilstm_kernel(gxf_ref, gxr_ref, whh_ref, h0_ref, c0_ref,
                   yf_ref, yr_ref, hn_ref, cn_ref, h_sc, c_sc):
    t = pl.program_id(0)

    @pl.when(t == 0)
    def _():
        h_sc[...] = h0_ref[...]
        c_sc[...] = c0_ref[...]

    b = gxf_ref.shape[1]
    h = h_sc.shape[-1]
    g4 = 4 * h

    # Recurrent projection for both directions at once (M = 2b rows on the MXU).
    mm = jnp.dot(h_sc[...].astype(jnp.bfloat16), whh_ref[...],
                 preferred_element_type=jnp.float32)            # (2b, 8H)
    gates_f = mm[:b, :g4] + gxf_ref[0]                          # (b, 4H)
    gates_r = mm[b:, g4:] + gxr_ref[0]                          # (b, 4H)
    gates = jnp.concatenate([gates_f, gates_r], axis=0)         # (2b, 4H)

    # Gate elementwise math stays in f32 (v5e has no bf16 VPU/EUP).
    i_g = jax.nn.sigmoid(gates[:, 0 * h:1 * h])
    f_g = jax.nn.sigmoid(gates[:, 1 * h:2 * h])
    g_g = jnp.tanh(gates[:, 2 * h:3 * h])
    o_g = jax.nn.sigmoid(gates[:, 3 * h:4 * h])

    c_new = f_g * c_sc[...] + i_g * g_g
    h_new = o_g * jnp.tanh(c_new)
    c_sc[...] = c_new
    h_sc[...] = h_new

    yf_ref[0] = h_new[:b]
    yr_ref[0] = h_new[b:]

    @pl.when(t == pl.num_programs(0) - 1)
    def _():
        hn_ref[...] = h_new
        cn_ref[...] = c_new


def bilstm_recurrence(gx_f, gx_r, whh_cat, h0_cat, c0_cat):
    s, b, g4 = gx_f.shape
    hdim = whh_cat.shape[0]
    fwd = lambda t: (t, 0, 0)
    rev = lambda t: (s - 1 - t, 0, 0)
    const2 = lambda t: (0, 0)
    return pl.pallas_call(
        _bilstm_kernel,
        grid=(s,),
        out_shape=(jax.ShapeDtypeStruct((s, b, hdim), jnp.float32),
                   jax.ShapeDtypeStruct((s, b, hdim), jnp.float32),
                   jax.ShapeDtypeStruct((2 * b, hdim), jnp.float32),
                   jax.ShapeDtypeStruct((2 * b, hdim), jnp.float32)),
        in_specs=[pl.BlockSpec((1, b, g4), fwd),
                  pl.BlockSpec((1, b, g4), rev),
                  pl.BlockSpec(whh_cat.shape, const2),
                  pl.BlockSpec((2 * b, hdim), const2),
                  pl.BlockSpec((2 * b, hdim), const2)],
        out_specs=(pl.BlockSpec((1, b, hdim), fwd),
                   pl.BlockSpec((1, b, hdim), rev),
                   pl.BlockSpec((2 * b, hdim), const2),
                   pl.BlockSpec((2 * b, hdim), const2)),
        scratch_shapes=[pltpu.VMEM((2 * b, hdim), jnp.float32),
                        pltpu.VMEM((2 * b, hdim), jnp.float32)],
        compiler_params=pltpu.CompilerParams(
            dimension_semantics=("arbitrary",),
            vmem_limit_bytes=VMEM_LIMIT),
    )(gx_f, gx_r, whh_cat, h0_cat, c0_cat)


def lstm_stack(x_tm, stack_params, h0, c0):
    """Multi-layer bidirectional LSTM, time-major (s, b, d) in/out, PyTorch state layout."""
    s, b, _ = x_tm.shape
    y = x_tm
    hn_list, cn_list = [], []
    for layer, lp in enumerate(stack_params):
        hdim = lp["whh"].shape[0]
        h0_cat = jnp.concatenate([h0[2 * layer], h0[2 * layer + 1]], axis=0)
        c0_cat = jnp.concatenate([c0[2 * layer], c0[2 * layer + 1]], axis=0)
        gx = gates_x(y.reshape(s * b, -1), lp["wih"], lp["bias"])      # (s*b, 8H)
        gx = gx.reshape(s, b, 8 * hdim)
        y_f, y_r, hn_cat, cn_cat = bilstm_recurrence(
            gx[..., :4 * hdim], gx[..., 4 * hdim:], lp["whh"], h0_cat, c0_cat)
        y = jnp.concatenate([y_f, y_r], axis=-1)                       # (s, b, 2H)
        hn_list += [hn_cat[:b], hn_cat[b:]]
        cn_list += [cn_cat[:b], cn_cat[b:]]
    return y, jnp.stack(hn_list), jnp.stack(cn_list)


# ---------------------------------------------------------------------------
# head: (lstm_out + res) @ W_out   (no bias; lane-dense padded to 128 cols)
# ---------------------------------------------------------------------------
def _head_kernel(x_ref, r_ref, w_ref, o_ref):
    acc = (x_ref[...] + r_ref[...]).astype(jnp.bfloat16)
    o_ref[...] = jnp.dot(acc, w_ref[...], preferred_element_type=jnp.float32)


def head(y2d, res2d, w_pad_bf16):
    n, d = y2d.shape
    cp = w_pad_bf16.shape[1]
    tm = _row_tile(n, 512)
    return pl.pallas_call(
        _head_kernel,
        grid=(pl.cdiv(n, tm),),
        out_shape=jax.ShapeDtypeStruct((n, cp), jnp.float32),
        in_specs=[pl.BlockSpec((tm, d), lambda i: (i, 0)),
                  pl.BlockSpec((tm, d), lambda i: (i, 0)),
                  pl.BlockSpec((d, cp), lambda i: (0, 0))],
        out_specs=pl.BlockSpec((tm, cp), lambda i: (i, 0)),
        compiler_params=pltpu.CompilerParams(
            dimension_semantics=("parallel",),
            vmem_limit_bytes=VMEM_LIMIT),
    )(y2d, res2d, w_pad_bf16)


# ---------------------------------------------------------------------------
# Full DeepSleepNet forward (time-major internally: one transpose in, one out)
# ---------------------------------------------------------------------------
def deepsleepnet_forward(pp, x, hidden, cell):
    b, s, l = x.shape
    n_cls = pp["n_classes"]
    x_tm = jnp.transpose(x, (1, 0, 2))                                 # (s, b, l)
    res = res_branch(x_tm.reshape(s * b, l),
                     pp["w_res"], pp["bn_scale"], pp["bn_shift"])      # (s*b, 2H)
    y1, h1, c1 = lstm_stack(x_tm, pp["lstm1"], hidden, cell)
    y2, _, _ = lstm_stack(y1, pp["lstm2"], h1, c1)
    # nn.Dropout is identity in eval mode.
    z = head(y2.reshape(s * b, -1), res, pp["w_out"])[:, :n_cls]
    return jnp.transpose(z.reshape(s, b, n_cls), (1, 0, 2))            # (b, s, n_cls)


# ---------------------------------------------------------------------------
# Parameter packing: concat per-direction weights, cast matmul operands to bf16,
# pad w_out to a lane-dense 128-column block.
# ---------------------------------------------------------------------------
def pack_params(params, n_layers):
    def pack_stack(ps):
        packed = []
        for layer in range(n_layers):
            wih_f, whh_f, b_f = ps[2 * layer]
            wih_r, whh_r, b_r = ps[2 * layer + 1]
            packed.append(dict(
                wih=jnp.concatenate([wih_f, wih_r], axis=1).astype(jnp.bfloat16),
                whh=jnp.concatenate([whh_f, whh_r], axis=1).astype(jnp.bfloat16),
                bias=jnp.concatenate([b_f, b_r], axis=1),   # f32 (1, 8H)
            ))
        return packed

    w_out = params["w_out"]
    c = w_out.shape[1]
    cp = ((c + 127) // 128) * 128
    w_out_pad = jnp.zeros((w_out.shape[0], cp), jnp.float32).at[:, :c].set(w_out)
    return dict(
        w_res=params["w_res"].astype(jnp.bfloat16),
        bn_scale=params["bn_scale"], bn_shift=params["bn_shift"],
        lstm1=pack_stack(params["lstm1"]), lstm2=pack_stack(params["lstm2"]),
        w_out=w_out_pad.astype(jnp.bfloat16), n_classes=c)


# ---------------------------------------------------------------------------
# Pure-JAX reference (same math; matmul operands cast to bf16 to mirror the
# MXU-native precision used by the kernels, accumulation in f32).
# ---------------------------------------------------------------------------
def reference_forward(params, x, hidden, cell):
    bf = jnp.bfloat16

    def mm(a, w):
        return jnp.dot(a.astype(bf), w.astype(bf), preferred_element_type=jnp.float32)

    b, s, l = x.shape
    x2d = x.reshape(b * s, l)
    res = jnp.maximum(mm(x2d, params["w_res"]) * params["bn_scale"]
                      + params["bn_shift"], 0.0)

    def lstm_dir(x_tm, wih, whh, bias, h0, c0, reverse):
        ss = x_tm.shape[0]
        hdim = h0.shape[-1]
        h, c = h0, c0
        ys = [None] * ss
        order = range(ss - 1, -1, -1) if reverse else range(ss)
        for t in order:
            gx = mm(x_tm[t], wih) + bias
            gates = mm(h, whh) + gx
            i = jax.nn.sigmoid(gates[:, :hdim])
            f = jax.nn.sigmoid(gates[:, hdim:2 * hdim])
            g = jnp.tanh(gates[:, 2 * hdim:3 * hdim])
            o = jax.nn.sigmoid(gates[:, 3 * hdim:])
            c = f * c + i * g
            h = o * jnp.tanh(c)
            ys[t] = h
        return jnp.stack(ys), h, c

    def stack(x_bf, ps, h0, c0):
        x_tm = jnp.transpose(x_bf, (1, 0, 2))
        hns, cns = [], []
        for layer in range(len(ps) // 2):
            outs = []
            for d in range(2):
                idx = layer * 2 + d
                wih, whh, bias = ps[idx]
                y, hn, cn = lstm_dir(x_tm, wih, whh, bias, h0[idx], c0[idx], d == 1)
                outs.append(y)
                hns.append(hn)
                cns.append(cn)
            x_tm = jnp.concatenate(outs, axis=-1)
        return jnp.transpose(x_tm, (1, 0, 2)), jnp.stack(hns), jnp.stack(cns)

    y1, h1, c1 = stack(x, params["lstm1"], hidden, cell)
    y2, _, _ = stack(y1, params["lstm2"], h1, c1)
    z = mm(y2.reshape(b * s, -1) + res, params["w_out"])
    return z.reshape(b, s, -1)


# ---------------------------------------------------------------------------
# Deterministic parameter init (shapes mirror the nn.Module's __init__)
# ---------------------------------------------------------------------------
def init_params(key, l, hdim, n_dir, n_layers, n_classes):
    keys = jax.random.split(key, 8)
    k = iter(keys)
    scale = 0.1
    d_res = hdim * n_dir            # == 1024 at full size; res must match lstm out

    w_res = jax.random.normal(next(k), (l, d_res), jnp.float32) * scale
    gamma = 1.0 + 0.1 * jax.random.normal(next(k), (d_res,), jnp.float32)
    beta = 0.1 * jax.random.normal(next(k), (d_res,), jnp.float32)
    rmean = 0.1 * jax.random.normal(next(k), (d_res,), jnp.float32)
    rvar = 1.0 + 0.1 * jnp.abs(jax.random.normal(next(k), (d_res,), jnp.float32))
    eps = 1e-5
    inv = gamma / jnp.sqrt(rvar + eps)
    bn_scale = inv.reshape(1, -1)
    bn_shift = (beta - rmean * inv).reshape(1, -1)

    def lstm_params(key, in0):
        ps = []
        ks = jax.random.split(key, n_layers * n_dir * 3)
        ki = iter(ks)
        for layer in range(n_layers):
            d_in = in0 if layer == 0 else hdim * n_dir
            for _ in range(n_dir):
                wih = jax.random.normal(next(ki), (d_in, 4 * hdim), jnp.float32) * scale
                whh = jax.random.normal(next(ki), (hdim, 4 * hdim), jnp.float32) * scale
                bias = jax.random.normal(next(ki), (1, 4 * hdim), jnp.float32) * scale
                ps.append((wih, whh, bias))
        return ps

    lstm1 = lstm_params(next(k), l)
    lstm2 = lstm_params(next(k), hdim * n_dir)
    w_out = jax.random.normal(next(k), (hdim * n_dir, n_classes), jnp.float32) * scale
    return dict(w_res=w_res, bn_scale=bn_scale, bn_shift=bn_shift,
                lstm1=lstm1, lstm2=lstm2, w_out=w_out)


if __name__ == "__main__":
    # Small shapes consistent with the module: input_size=L, hidden=HID,
    # bidirectional (2 dirs), 2 RNN layers, 5 classes; res-dim == hidden*2.
    B, S, L = 2, 8, 32
    HID, NDIR, NLAYERS, NCLS = 16, 2, 2, 5

    key = jax.random.PRNGKey(0)
    kx, kp = jax.random.split(key)
    x = jax.random.normal(kx, (B, S, L), jnp.float32)
    params = init_params(kp, L, HID, NDIR, NLAYERS, NCLS)
    packed = pack_params(params, NLAYERS)

    # init_state(batch_size)
    hidden = jnp.zeros((NLAYERS * NDIR, B, HID), jnp.float32)
    cell = jnp.zeros((NLAYERS * NDIR, B, HID), jnp.float32)

    out = deepsleepnet_forward(packed, x, hidden, cell)
    out = jax.block_until_ready(out)

    ref = reference_forward(params, x, hidden, cell)
    assert out.shape == (B, S, NCLS), out.shape
    err = float(jnp.max(jnp.abs(out - ref)))
    assert err < 5e-3, err
    print("KERNEL_OK")
</pallas_src>

<mosaic_0001>
module attributes {stable_mosaic.version = 11 : i64} {
  func.func @_res_kernel(%arg0: i32, %arg1: memref<16x32xbf16, #tpu.memory_space<vmem>>, %arg2: memref<32x32xbf16, #tpu.memory_space<vmem>>, %arg3: memref<1x32xf32, #tpu.memory_space<vmem>>, %arg4: memref<1x32xf32, #tpu.memory_space<vmem>>, %arg5: memref<16x32xf32, #tpu.memory_space<vmem>>) attributes {dimension_semantics = [#tpu.dimension_semantics<parallel>], iteration_bounds = array<i64: 1>, scalar_prefetch = 0 : i64, scratch_operands = 0 : i64, tpu.core_type = #tpu.core_type<tc>, window_params = [{transform_indices = @transform_0, window_bounds = array<i64: 16, 32>}, {pipeline_mode = #tpu.pipeline_mode<synchronous>, transform_indices = @transform_1, window_bounds = array<i64: 32, 32>}, {pipeline_mode = #tpu.pipeline_mode<synchronous>, transform_indices = @transform_2, window_bounds = array<i64: 1, 32>}, {pipeline_mode = #tpu.pipeline_mode<synchronous>, transform_indices = @transform_3, window_bounds = array<i64: 1, 32>}, {transform_indices = @transform_4, window_bounds = array<i64: 16, 32>}]} {
    %c0 = arith.constant 0 : index
    %c0_0 = arith.constant 0 : index
    %0 = vector.load %arg1[%c0, %c0_0] : memref<16x32xbf16, #tpu.memory_space<vmem>>, vector<16x32xbf16>
    %c0_1 = arith.constant 0 : index
    %c0_2 = arith.constant 0 : index
    %1 = vector.load %arg2[%c0_1, %c0_2] : memref<32x32xbf16, #tpu.memory_space<vmem>>, vector<32x32xbf16>
    %cst = arith.constant dense<0.000000e+00> : vector<16x32xf32>
    %2 = tpu.matmul %0, %1, %cst {dimension_numbers = #tpu.dot_dimension_numbers<[1], [0], [0], [1], [0, 0, 1, 1], [], []>} : vector<16x32xbf16>, vector<32x32xbf16>, vector<16x32xf32> -> vector<16x32xf32>
    %c0_3 = arith.constant 0 : index
    %c0_4 = arith.constant 0 : index
    %3 = vector.load %arg3[%c0_3, %c0_4] : memref<1x32xf32, #tpu.memory_space<vmem>>, vector<1x32xf32>
    %4 = vector.broadcast %3 : vector<1x32xf32> to vector<16x32xf32>
    %5 = arith.mulf %2, %4 : vector<16x32xf32>
    %c0_5 = arith.constant 0 : index
    %c0_6 = arith.constant 0 : index
    %6 = vector.load %arg4[%c0_5, %c0_6] : memref<1x32xf32, #tpu.memory_space<vmem>>, vector<1x32xf32>
    %7 = vector.broadcast %6 : vector<1x32xf32> to vector<16x32xf32>
    %8 = arith.addf %5, %7 : vector<16x32xf32>
    %cst_7 = arith.constant 0.000000e+00 : f32
    %9 = vector.broadcast %cst_7 : f32 to vector<16x32xf32>
    %10 = arith.maximumf %8, %9 : vector<16x32xf32>
    %c0_8 = arith.constant 0 : index
    %c0_9 = arith.constant 0 : index
    %11 = vector.load %arg5[%c0_8, %c0_9] : memref<16x32xf32, #tpu.memory_space<vmem>>, vector<16x32xf32>
    tpu.vector_store %arg5[%c0_8, %c0_9], %10 {strides = array<i32>} : memref<16x32xf32, #tpu.memory_space<vmem>>, vector<16x32xf32>,
    return
  }
  func.func @transform_0(%arg0: i32) -> (i32, i32) {
    %c0_i32 = arith.constant 0 : i32
    %c0_i32_0 = arith.constant 0 : i32
    return %arg0, %c0_i32 : i32, i32
  }
  func.func @transform_1(%arg0: i32) -> (i32, i32) {
    %c0_i32 = arith.constant 0 : i32
    %c0_i32_0 = arith.constant 0 : i32
    %c0_i32_1 = arith.constant 0 : i32
    return %c0_i32, %c0_i32_0 : i32, i32
  }
  func.func @transform_2(%arg0: i32) -> (i32, i32) {
    %c0_i32 = arith.constant 0 : i32
    %c0_i32_0 = arith.constant 0 : i32
    %c0_i32_1 = arith.constant 0 : i32
    return %c0_i32, %c0_i32_0 : i32, i32
  }
  func.func @transform_3(%arg0: i32) -> (i32, i32) {
    %c0_i32 = arith.constant 0 : i32
    %c0_i32_0 = arith.constant 0 : i32
    %c0_i32_1 = arith.constant 0 : i32
    return %c0_i32, %c0_i32_0 : i32, i32
  }
  func.func @transform_4(%arg0: i32) -> (i32, i32) {
    %c0_i32 = arith.constant 0 : i32
    %c0_i32_0 = arith.constant 0 : i32
    return %arg0, %c0_i32 : i32, i32
  }
}

</mosaic_0001>

<llo_original>
// kernel: tpu_custom_call.1
$region0: #{tpu_custom_call.1}
  #allocation0 [shape = 'u32[]', space=smem, size = 0x4, offset = 0x4, fixed_abs, tag = 'smem constant byte address 0x4 - core index']
  #allocation1 [shape = 'u32[144,128]{1,0:T(1,128)}', space=vmem, size = 0x12000, scoped, tag = 'internal scratch']
  %s0 = inlined_call_operand.hbm [shape: bf16[16,32], index: 0, kind: input, shape index: {}]
  %s1 = inlined_call_operand.hbm [shape: bf16[32,32], index: 1, kind: input, shape index: {}]
  %s2 = inlined_call_operand.vmem [shape: f32[1,32], index: 2, kind: input, shape index: {}]
  %s3 = inlined_call_operand.vmem [shape: f32[1,32], index: 3, kind: input, shape index: {}]
  %s4 = inlined_call_operand.hbm [shape: f32[16,32], index: 4, kind: output, shape index: {}]
  %s5 = sld [smem:[#allocation0]]
  $region34: #{tpu_custom_call.1} parent=0
    _
  %s7 = ssub.s32 1, %s5
  %s8 = scalar_select 0, %s7, %s5
  $region1: #{tpu_custom_call.1} parent=0
    #allocation2 [shape = 'u8[4096]{0}', space=vmem, size = 0x1000, scoped, tag = 'input window, operand 0, single buffered']
    #allocation3 [shape = 's32[1]{0}', space=sflag, size = 0x4, scoped, tag = 'scoped memory for tpu_custom_call.1']
    #allocation4 [shape = 's32[1]{0}', space=sflag, size = 0x4, scoped, tag = 'scoped memory for tpu_custom_call.1']
    #allocation5 [shape = 'u8[8192]{0}', space=vmem, size = 0x2000, scoped, tag = 'input window, operand 1, single buffered']
    #allocation6 [shape = 's32[1]{0}', space=sflag, size = 0x4, scoped, tag = 'scoped memory for tpu_custom_call.1']
    #allocation7 [shape = 'u8[8192]{0}', space=vmem, size = 0x2000, scoped, tag = 'output window, operand 0, single buffered']
    %9 = vsyncpa [#allocation3], 0
    %10 = vsyncpa [#allocation6], 0
    %11 = vsyncpa [#allocation4], 0
    // Predicated region
    $region2: #{tpu_custom_call.1} parent=1 // pred_check
      _
    $region3: #{tpu_custom_call.1} parent=1 // pred_check_branch
      %13 = sbr.rel (0) target = $region5
    $region4: #{tpu_custom_call.1} parent=1 // pred_region
      %s15 = ssub.s32 128, 128
      %16 = vsyncadd [#allocation3], %s15
      %s17 = sshll.u32 [#allocation2], 4
      %s18 = int_to_ptr.vmem [resolvable:$true] %s17
      %23 = dma.hbm_to_vmem [thread:$0]  %s0, 128, %s18, [#allocation3], 64, 64, 4
    $region5: #{tpu_custom_call.1} parent=1 // pred_fallthru
      _
    // Predicated region
    $region6: #{tpu_custom_call.1} parent=1 // pred_check
      _
    $region7: #{tpu_custom_call.1} parent=1 // pred_check_branch
      %25 = sbr.rel (0) target = $region9
    $region8: #{tpu_custom_call.1} parent=1 // pred_region
      %s27 = ssub.s32 256, 256
      %28 = vsyncadd [#allocation6], %s27
      %s29 = sshll.u32 [#allocation5], 4
      %s30 = int_to_ptr.vmem [resolvable:$true] %s29
      %35 = dma.hbm_to_vmem [thread:$0]  %s1, 256, %s30, [#allocation6], 64, 64, 4
    $region9: #{tpu_custom_call.1} parent=1 // pred_fallthru
      _
    // Predicated region
    $region10: #{tpu_custom_call.1} parent=1 // pred_check
      _
    $region11: #{tpu_custom_call.1} parent=1 // pred_check_branch
      %37 = sbr.rel (0) target = $region13
    $region12: #{tpu_custom_call.1} parent=1 // pred_region
      _
    $region13: #{tpu_custom_call.1} parent=1 // pred_fallthru
      _
    // Predicated region
    $region14: #{tpu_custom_call.1} parent=1 // pred_check
      _
    $region15: #{tpu_custom_call.1} parent=1 // pred_check_branch
      %39 = sbr.rel (0) target = $region17
    $region16: #{tpu_custom_call.1} parent=1 // pred_region
      _
    $region17: #{tpu_custom_call.1} parent=1 // pred_fallthru
      _
    // Predicated region
    $region18: #{tpu_custom_call.1} parent=1 // pred_check
      _
    $region19: #{tpu_custom_call.1} parent=1 // pred_check_branch
      %41 = sbr.rel (0) target = $region21
    $region20: #{tpu_custom_call.1} parent=1 // pred_region
      %42 = dma.done [#allocation3], 128
    $region21: #{tpu_custom_call.1} parent=1 // pred_fallthru
      _
    // Predicated region
    $region22: #{tpu_custom_call.1} parent=1 // pred_check
      _
    $region23: #{tpu_custom_call.1} parent=1 // pred_check_branch
      %44 = sbr.rel (0) target = $region25
    $region24: #{tpu_custom_call.1} parent=1 // pred_region
      %45 = dma.done [#allocation6], 256
    $region25: #{tpu_custom_call.1} parent=1 // pred_fallthru
      _
    %v47 = vld [vmem:[#allocation2] sm:$0xf]
    %v48 = vld [vmem:[#allocation2 + $0x4] sm:$0xf]
    %v49 = vld [vmem:[#allocation5] sm:$0xf]
    %v50 = vld [vmem:[#allocation5 + $0x4] sm:$0xf]
    %v51 = vld [vmem:[#allocation5 + $0x8] sm:$0xf]
    %v52 = vld [vmem:[#allocation5 + $0xc] sm:$0xf]
    %v55 = vunpack.c.l.b16 %v47
    %v56 = vunpack.c.l.b16 %v48
    %v57 = vpack.c.b16 %v56, %v55
    %v62 = vunpack.c.l.b16 %v49
    %v63 = vunpack.c.l.b16 %v50
    %v64 = vunpack.c.l.b16 %v51
    %v65 = vunpack.c.l.b16 %v52
    %v66 = vpack.c.b16 %v63, %v62
    %v67 = vpack.c.b16 %v65, %v64
    %vm70 = vcmask 261120
    %v72 = vsel %vm70, %v57, 0
    %74 = vmatprep.subr.bf16.mxu0 0
    %75 = vmatpush1.bf16.msra.mxu0 %v66
    %76 = vmatprep.subr.bf16.mxu0 0
    %77 = vmatpush1.bf16.msra.mxu0 %v67
    %78 = vmatprep.subr.bf16.mxu0 0
    %79 = vmatpush1.bf16.msra.mxu0 0
    %80 = vmatprep.subr.bf16.mxu0 0
    %81 = vmatpush1.bf16.msra.mxu0 0
    %82 = vmatprep.subr.bf16.mxu0 0
    %83 = vmatpush1.bf16.msra.mxu0 0
    %84 = vmatprep.subr.bf16.mxu0 0
    %85 = vmatpush1.bf16.msra.mxu0 0
    %86 = vmatprep.subr.bf16.mxu0 0
    %87 = vmatpush1.bf16.msra.mxu0 0
    %88 = vmatprep.subr.bf16.mxu0 0
    %89 = vmatpush1.bf16.msra.mxu0 0
    %90 = vmatprep.subr.bf16.mxu0 0
    %91 = vmatpush1.bf16.msra.mxu0 0
    %92 = vmatprep.subr.bf16.mxu0 0
    %93 = vmatpush1.bf16.msra.mxu0 0
    %94 = vmatprep.subr.bf16.mxu0 0
    %95 = vmatpush1.bf16.msra.mxu0 0
    %96 = vmatprep.subr.bf16.mxu0 0
    %97 = vmatpush1.bf16.msra.mxu0 0
    %98 = vmatprep.subr.bf16.mxu0 0
    %99 = vmatpush1.bf16.msra.mxu0 0
    %100 = vmatprep.subr.bf16.mxu0 0
    %101 = vmatpush1.bf16.msra.mxu0 0
    %102 = vmatprep.subr.bf16.mxu0 0
    %103 = vmatpush1.bf16.msra.mxu0 0
    %104 = vmatprep.subr.bf16.mxu0 0
    %105 = vmatpush1.bf16.msra.mxu0 0
    %106 = vmatprep.mubr.bf16.mxu0 0
    %107 = vmatmul.mubr.bf16.gmra.mrb[0].mxu0 %v72
    %v108 = vpop.f32.mrb[0].mxu0
    %v109 = vadd.f32 0.0, %v108
    %v110 = vpop.f32.mrb[0].mxu0
    %v111 = vpop.f32.mrb[0].mxu0
    %v112 = vadd.f32 0.0, %v111
    %v113 = vpop.f32.mrb[0].mxu0
    %114 = vdwg.mxu0
    %v115 = vld [vmem:[%s2] sm:$0x1]
    %v117 = vlaneseq
    %v118 = vshrl.u32 %v117, 7
    %v119 = vsub.s32 0, %v118
    %v120 = vrot.slane %v115, %v119
    %v122 = vmul.f32 %v109, %v120
    %v123 = vmul.f32 %v112, %v120
    %v124 = vld [vmem:[%s3] sm:$0x1]
    %v126 = vlaneseq
    %v127 = vshrl.u32 %v126, 7
    %v128 = vsub.s32 0, %v127
    %v129 = vrot.slane %v124, %v128
    %v131 = vadd.f32 %v122, %v129
    %v132 = vadd.f32 %v123, %v129
    %v133 = vmax.f32 %v131, 0.0
    %v134 = vmax.f32 %v132, 0.0
    %135 = vst.msk [vmem:[#allocation7] sm:$0xff] %vm70, %v133
    %136 = vst.msk [vmem:[#allocation7 + $0x8] sm:$0xff] %vm70, %v134
    // Predicated region
    $region26: #{tpu_custom_call.1} parent=1 // pred_check
      _
    $region27: #{tpu_custom_call.1} parent=1 // pred_check_branch
      %138 = sbr.rel (0) target = $region29
    $region28: #{tpu_custom_call.1} parent=1 // pred_region
      %s140 = ssub.s32 256, 256
      %141 = vsyncadd [#allocation4], %s140
      %s142 = sshll.u32 [#allocation7], 4
      %s143 = int_to_ptr.vmem [resolvable:$true] %s142
      %148 = dma.vmem_to_hbm [thread:$0]  %s143, 256, %s4, [#allocation4], 128, 128, 8
    $region29: #{tpu_custom_call.1} parent=1 // pred_fallthru
      _
    // Predicated region
    $region30: #{tpu_custom_call.1} parent=1 // pred_check
      _
    $region31: #{tpu_custom_call.1} parent=1 // pred_check_branch
      %150 = sbr.rel (0) target = $region33
    $region32: #{tpu_custom_call.1} parent=1 // pred_region
      %151 = dma.done [#allocation4], 256
    $region33: #{tpu_custom_call.1} parent=1 // pred_fallthru
      _
    %152 = vsyncpa [#allocation3], 1
    %153 = vsyncpa [#allocation6], 1
    %154 = vsyncpa [#allocation4], 1

</llo_original>
